<compile_context>
chip_gen: v7x
topology: tpu7x:2x2x1
jax: 0.10.0
libtpu: 0.0.40
codegen_flags: <defaults>
</compile_context>

<pallas_src>
import functools
import math

import numpy as np
import jax
import jax.numpy as jnp
from jax.experimental import pallas as pl
from jax.experimental.pallas import tpu as pltpu


def _row_tile(m, cap=512):
    """Largest nice row tile that divides m (full m if nothing divides)."""
    for t in (512, 256, 128, 64, 32, 16, 8):
        if t <= cap and m % t == 0:
            return t
    return m


# ---------------------------------------------------------------------------
# Kernel 1: fused QKV projections for both paths (low-rank + full-rank).
# ---------------------------------------------------------------------------
def _qkv_kernel(x_ref,
                aq_ref, pq_ref, ak_ref, pk_ref, av_ref, pv_ref,   # low-rank A=[H,r], P=U.T=[r,H]
                wq_ref, wk_ref, wv_ref,                            # full-rank W=[H,H]
                bq_ref, bk_ref, bv_ref,                            # biases [1,H]
                qlr_ref, klr_ref, vlr_ref, qfb_ref, kfb_ref, vfb_ref):
    x = x_ref[...]

    def lowrank(a_ref, p_ref, b_ref):
        t = jnp.dot(x, a_ref[...], preferred_element_type=jnp.float32)
        return jnp.dot(t, p_ref[...], preferred_element_type=jnp.float32) + b_ref[...]

    def fullrank(w_ref, b_ref):
        return jnp.dot(x, w_ref[...], preferred_element_type=jnp.float32) + b_ref[...]

    qlr_ref[...] = lowrank(aq_ref, pq_ref, bq_ref).astype(qlr_ref.dtype)
    klr_ref[...] = lowrank(ak_ref, pk_ref, bk_ref).astype(klr_ref.dtype)
    vlr_ref[...] = lowrank(av_ref, pv_ref, bv_ref).astype(vlr_ref.dtype)
    qfb_ref[...] = fullrank(wq_ref, bq_ref).astype(qfb_ref.dtype)
    kfb_ref[...] = fullrank(wk_ref, bk_ref).astype(kfb_ref.dtype)
    vfb_ref[...] = fullrank(wv_ref, bv_ref).astype(vfb_ref.dtype)


def fused_qkv(x2, Aq, Pq, Ak, Pk, Av, Pv, Wq, Wk, Wv, bq, bk, bv):
    M, H = x2.shape
    r = Aq.shape[1]
    tm = _row_tile(M)
    row = pl.BlockSpec((tm, H), lambda i: (i, 0))
    res = lambda shape: pl.BlockSpec(shape, lambda i: (0, 0))  # resident weight/bias

    flops = int(2 * M * (3 * H * H + 6 * H * r))
    bytes_acc = int(4 * (7 * M * H + 3 * H * H + 6 * H * r + 3 * H))

    return pl.pallas_call(
        _qkv_kernel,
        out_shape=[jax.ShapeDtypeStruct((M, H), jnp.float32)] * 6,
        grid_spec=pltpu.PrefetchScalarGridSpec(
            num_scalar_prefetch=0,
            grid=(M // tm,),
            in_specs=[row,
                      res((H, r)), res((r, H)),
                      res((H, r)), res((r, H)),
                      res((H, r)), res((r, H)),
                      res((H, H)), res((H, H)), res((H, H)),
                      res((1, H)), res((1, H)), res((1, H))],
            out_specs=[pl.BlockSpec((tm, H), lambda i: (i, 0)) for _ in range(6)]),
        compiler_params=pltpu.CompilerParams(dimension_semantics=("parallel",)),
        cost_estimate=pl.CostEstimate(flops=flops, transcendentals=0,
                                      bytes_accessed=bytes_acc),
    )(x2, Aq, Pq, Ak, Pk, Av, Pv, Wq, Wk, Wv,
      bq.reshape(1, H), bk.reshape(1, H), bv.reshape(1, H))


# ---------------------------------------------------------------------------
# Kernel 2: dual-path attention core + output projections + alpha blend.
# One grid step = one (batch, query-tile); all heads & both paths together.
# ---------------------------------------------------------------------------
def _attn_out_kernel(qlr_ref, klr_ref, vlr_ref, qfb_ref, kfb_ref, vfb_ref,
                     mask_ref, ao_ref, po_ref, wo_ref, bo_ref, o_ref,
                     *, scale, alpha, num_heads, head_dim):
    m = mask_ref[...]                                          # (1, tq, Tk)

    def context(q_ref, k_ref, v_ref):
        q = q_ref[0]                                           # (nH, tq, dH)
        k = k_ref[0]                                           # (nH, Tk, dH)
        v = v_ref[0]                                           # (nH, Tk, dH)
        s = jnp.einsum('hqd,hkd->hqk', q, k,
                       preferred_element_type=jnp.float32) * scale
        s = s + m                                              # broadcast over heads
        s = s - jnp.max(s, axis=-1, keepdims=True)
        p = jnp.exp(s)
        w = p * pl.reciprocal(jnp.sum(p, axis=-1, keepdims=True), approx=True)
        return jnp.einsum('hqk,hkd->hqd', w, v,
                          preferred_element_type=jnp.float32)  # (nH, tq, dH)

    c_lr = context(qlr_ref, klr_ref, vlr_ref)
    c_fb = context(qfb_ref, kfb_ref, vfb_ref)

    dH = head_dim
    # combine(ctx) @ W  ==  sum_h ctx[h] @ W[h*dH:(h+1)*dH]  -> no in-kernel transpose.
    t_lr = jnp.dot(c_lr[0], ao_ref[0:dH, :], preferred_element_type=jnp.float32)
    y_fb = jnp.dot(c_fb[0], wo_ref[0:dH, :], preferred_element_type=jnp.float32)
    for h in range(1, num_heads):
        sl = slice(h * dH, (h + 1) * dH)
        t_lr = t_lr + jnp.dot(c_lr[h], ao_ref[sl, :], preferred_element_type=jnp.float32)
        y_fb = y_fb + jnp.dot(c_fb[h], wo_ref[sl, :], preferred_element_type=jnp.float32)

    bo = bo_ref[...]
    y_lr = jnp.dot(t_lr, po_ref[...], preferred_element_type=jnp.float32) + bo
    y_fb = y_fb + bo
    o_ref[0] = (alpha * y_lr + (1.0 - alpha) * y_fb).astype(o_ref.dtype)


def fused_attention_output(Qlr, Klr, Vlr, Qfb, Kfb, Vfb, mask_b,
                           Ao, Po, Wo, bo, alpha, num_heads, head_dim):
    # Q*: [B, nH, Tq, dH], K*/V*: [B, nH, Tk, dH], mask_b: [B, Tq, Tk]
    B, nH, Tq, dH = Qlr.shape
    Tk = Klr.shape[2]
    H = nH * dH
    r = Ao.shape[1]
    tq = _row_tile(Tq, cap=256)
    scale = 1.0 / math.sqrt(head_dim)
    kernel = functools.partial(_attn_out_kernel, scale=scale, alpha=float(alpha),
                               num_heads=nH, head_dim=dH)

    q_blk = pl.BlockSpec((1, nH, tq, dH), lambda b, t: (b, 0, t, 0))
    kv_blk = pl.BlockSpec((1, nH, Tk, dH), lambda b, t: (b, 0, 0, 0))
    m_blk = pl.BlockSpec((1, tq, Tk), lambda b, t: (b, t, 0))
    res = lambda shape: pl.BlockSpec(shape, lambda b, t: (0, 0))

    flops = int(8 * B * nH * Tq * Tk * dH            # 2 paths x (QK^T + PV)
                + 2 * B * Tq * (H * H + 2 * H * r)    # output projections
                + 4 * B * Tq * H)                     # blend
    bytes_acc = int(4 * (6 * B * nH * max(Tq, Tk) * dH + B * Tq * Tk
                         + H * H + 2 * H * r + H + B * Tq * H))

    return pl.pallas_call(
        kernel,
        out_shape=jax.ShapeDtypeStruct((B, Tq, H), jnp.float32),
        grid_spec=pltpu.PrefetchScalarGridSpec(
            num_scalar_prefetch=0,
            grid=(B, Tq // tq),
            in_specs=[q_blk, kv_blk, kv_blk,
                      q_blk, kv_blk, kv_blk,
                      m_blk,
                      res((H, r)), res((r, H)), res((H, H)), res((1, H))],
            out_specs=pl.BlockSpec((1, tq, H), lambda b, t: (b, t, 0))),
        compiler_params=pltpu.CompilerParams(
            dimension_semantics=("parallel", "arbitrary")),
        cost_estimate=pl.CostEstimate(flops=flops,
                                      transcendentals=int(2 * B * nH * Tq * Tk),
                                      bytes_accessed=bytes_acc),
    )(Qlr, Klr, Vlr, Qfb, Kfb, Vfb, mask_b, Ao, Po, Wo, bo.reshape(1, H))


# ---------------------------------------------------------------------------
# Module glue reproducing RoadrunnerAttention.forward control flow.
# ---------------------------------------------------------------------------
class RoadrunnerAttentionPallas:
    """svd[name] = (U[H,r], S[r], Vh[H,r], b[H]); full_weights[name] = W[H,H].

    The 'original' torch module is opaque; its fallback path is modeled as a
    standard full-rank MHA y = x @ W + b using the pre-SVD weights and the
    same bias / mask handling as the low-rank path.
    """

    def __init__(self, num_heads, head_dim, svd, full_weights, alpha=0.6):
        self.num_heads = int(num_heads)
        self.head_dim = int(head_dim)
        self.hidden_dim = self.num_heads * self.head_dim
        self.alpha = float(alpha)

        def lowrank(name):
            U, S, Vh, b = svd[name]
            A = jnp.asarray(Vh) * jnp.asarray(S)[None, :]   # fold S into Vh once
            P = jnp.asarray(U).T                            # [r, H]
            return A, P, jnp.asarray(b)

        self.Aq, self.Pq, self.bq = lowrank('q')
        self.Ak, self.Pk, self.bk = lowrank('k')
        self.Av, self.Pv, self.bv = lowrank('v')
        self.Ao, self.Po, self.bo = lowrank('o')
        self.Wq = jnp.asarray(full_weights['q'])
        self.Wk = jnp.asarray(full_weights['k'])
        self.Wv = jnp.asarray(full_weights['v'])
        self.Wo = jnp.asarray(full_weights['o'])

    def _to_heads(self, y, B, T):
        return y.reshape(B, T, self.num_heads, self.head_dim).transpose(0, 2, 1, 3)

    def forward(self, x, layer_past=None, attention_mask=None, head_mask=None,
                use_cache=False, output_attentions=False):
        assert head_mask is None  # TODO(synk): head_mask multiply of attention weights not ported
        # TODO(synk): output_attentions=True would need the attention kernel to
        # also write the softmax weights; not implemented.
        B, T, H = x.shape
        nH, dH = self.num_heads, self.head_dim
        x2 = x.reshape(B * T, H)

        qlr, klr, vlr, qfb, kfb, vfb = fused_qkv(
            x2, self.Aq, self.Pq, self.Ak, self.Pk, self.Av, self.Pv,
            self.Wq, self.Wk, self.Wv, self.bq, self.bk, self.bv)

        Qlr, Klr, Vlr = (self._to_heads(t, B, T) for t in (qlr, klr, vlr))
        Qfb, Kfb, Vfb = (self._to_heads(t, B, T) for t in (qfb, kfb, vfb))

        if layer_past is not None:
            past_k, past_v = layer_past
            Klr = jnp.concatenate([past_k, Klr], axis=2)
            Vlr = jnp.concatenate([past_v, Vlr], axis=2)
            Kfb = jnp.concatenate([past_k, Kfb], axis=2)
            Vfb = jnp.concatenate([past_v, Vfb], axis=2)
        present = (Klr, Vlr) if use_cache else None

        Tk = Klr.shape[2]
        if attention_mask is None:
            mask_b = jnp.zeros((B, T, Tk), jnp.float32)
        else:
            mask_b = jnp.broadcast_to(attention_mask, (B, 1, T, Tk)) \
                        .reshape(B, T, Tk).astype(jnp.float32)

        combined = fused_attention_output(
            Qlr, Klr, Vlr, Qfb, Kfb, Vfb, mask_b,
            self.Ao, self.Po, self.Wo, self.bo, self.alpha, nH, dH)   # (B, T, H)
        return combined, present


# ---------------------------------------------------------------------------
# Pure-JAX reference mirroring the torch math exactly (for correctness check).
# ---------------------------------------------------------------------------
def reference_forward(x, svd, full_w, num_heads, head_dim, alpha, attention_mask=None):
    B, T, H = x.shape

    def lowrank_proj(inp, name):
        U, S, Vh, b = svd[name]
        y = (inp @ Vh) * S
        return y @ U.T + b

    def full_proj(inp, name):
        return inp @ full_w[name] + svd[name][3]

    def heads(y): return y.reshape(B, T, num_heads, head_dim).transpose(0, 2, 1, 3)
    def combine(y): return y.transpose(0, 2, 1, 3).reshape(B, T, H)

    def attn(Q, K, V):
        s = jnp.einsum('bhqd,bhkd->bhqk', Q, K) / (head_dim ** 0.5)
        if attention_mask is not None:
            s = s + attention_mask
        w = jax.nn.softmax(s, axis=-1)
        return jnp.einsum('bhqk,bhkd->bhqd', w, V)

    ctx = combine(attn(heads(lowrank_proj(x, 'q')),
                       heads(lowrank_proj(x, 'k')),
                       heads(lowrank_proj(x, 'v'))))
    out = lowrank_proj(ctx, 'o')

    ctxf = combine(attn(heads(full_proj(x, 'q')),
                        heads(full_proj(x, 'k')),
                        heads(full_proj(x, 'v'))))
    outf = full_proj(ctxf, 'o')

    return alpha * out + (1.0 - alpha) * outf


# ---------------------------------------------------------------------------
if __name__ == "__main__":
    B, T, num_heads, head_dim, rank = 2, 8, 4, 8, 8
    H = num_heads * head_dim
    alpha = 0.6

    root = jax.random.PRNGKey(0)
    kx, kq, kk, kv, ko = jax.random.split(root, 5)
    x = jax.random.normal(kx, (B, T, H), jnp.float32)

    def make_layer(k):
        kw, kb = jax.random.split(k)
        W = jax.random.normal(kw, (H, H), jnp.float32) * 0.15
        b = jax.random.normal(kb, (H,), jnp.float32) * 0.2
        return W, b

    full_w, svd = {}, {}
    for name, k in zip(('q', 'k', 'v', 'o'), (kq, kk, kv, ko)):
        W, b = make_layer(k)
        u, s, vt = np.linalg.svd(np.asarray(W), full_matrices=False)
        Vh = jnp.asarray(u[:, :rank])         # [H, r]  (x @ Vh)
        S = jnp.asarray(s[:rank])             # [r]
        U = jnp.asarray(vt[:rank, :].T)       # [H, r]  (@ U.T)
        full_w[name] = W
        svd[name] = (U, S, Vh, b)

    # GPT-2 style additive causal mask (broadcast over batch and heads)
    causal = jnp.where(jnp.tril(jnp.ones((T, T), bool)), 0.0, -1e9).astype(jnp.float32)
    attention_mask = causal[None, None, :, :]

    module = RoadrunnerAttentionPallas(num_heads, head_dim, svd, full_w, alpha=alpha)
    out, present = module.forward(x, attention_mask=attention_mask, use_cache=True)
    out = jax.block_until_ready(out)

    ref = reference_forward(x, svd, full_w, num_heads, head_dim, alpha,
                            attention_mask=attention_mask)

    assert out.shape == (B, T, H)
    assert present[0].shape == (B, num_heads, T, head_dim)
    assert present[1].shape == (B, num_heads, T, head_dim)
    np.testing.assert_allclose(np.asarray(out), np.asarray(ref), atol=2e-2, rtol=2e-2)

    print("KERNEL_OK")
</pallas_src>

<mosaic_0001>
module attributes {stable_mosaic.version = 11 : i64} {
  func.func @_qkv_kernel(%arg0: i32, %arg1: memref<16x32xf32, #tpu.memory_space<vmem>>, %arg2: memref<32x8xf32, #tpu.memory_space<vmem>>, %arg3: memref<8x32xf32, #tpu.memory_space<vmem>>, %arg4: memref<32x8xf32, #tpu.memory_space<vmem>>, %arg5: memref<8x32xf32, #tpu.memory_space<vmem>>, %arg6: memref<32x8xf32, #tpu.memory_space<vmem>>, %arg7: memref<8x32xf32, #tpu.memory_space<vmem>>, %arg8: memref<32x32xf32, #tpu.memory_space<vmem>>, %arg9: memref<32x32xf32, #tpu.memory_space<vmem>>, %arg10: memref<32x32xf32, #tpu.memory_space<vmem>>, %arg11: memref<1x32xf32, #tpu.memory_space<vmem>>, %arg12: memref<1x32xf32, #tpu.memory_space<vmem>>, %arg13: memref<1x32xf32, #tpu.memory_space<vmem>>, %arg14: memref<16x32xf32, #tpu.memory_space<vmem>>, %arg15: memref<16x32xf32, #tpu.memory_space<vmem>>, %arg16: memref<16x32xf32, #tpu.memory_space<vmem>>, %arg17: memref<16x32xf32, #tpu.memory_space<vmem>>, %arg18: memref<16x32xf32, #tpu.memory_space<vmem>>, %arg19: memref<16x32xf32, #tpu.memory_space<vmem>>) attributes {dimension_semantics = [#tpu.dimension_semantics<parallel>], iteration_bounds = array<i64: 1>, scalar_prefetch = 0 : i64, scratch_operands = 0 : i64, tpu.core_type = #tpu.core_type<tc>, window_params = [{transform_indices = @transform_0, window_bounds = array<i64: 16, 32>}, {pipeline_mode = #tpu.pipeline_mode<synchronous>, transform_indices = @transform_1, window_bounds = array<i64: 32, 8>}, {pipeline_mode = #tpu.pipeline_mode<synchronous>, transform_indices = @transform_2, window_bounds = array<i64: 8, 32>}, {pipeline_mode = #tpu.pipeline_mode<synchronous>, transform_indices = @transform_3, window_bounds = array<i64: 32, 8>}, {pipeline_mode = #tpu.pipeline_mode<synchronous>, transform_indices = @transform_4, window_bounds = array<i64: 8, 32>}, {pipeline_mode = #tpu.pipeline_mode<synchronous>, transform_indices = @transform_5, window_bounds = array<i64: 32, 8>}, {pipeline_mode = #tpu.pipeline_mode<synchronous>, transform_indices = @transform_6, window_bounds = array<i64: 8, 32>}, {pipeline_mode = #tpu.pipeline_mode<synchronous>, transform_indices = @transform_7, window_bounds = array<i64: 32, 32>}, {pipeline_mode = #tpu.pipeline_mode<synchronous>, transform_indices = @transform_8, window_bounds = array<i64: 32, 32>}, {pipeline_mode = #tpu.pipeline_mode<synchronous>, transform_indices = @transform_9, window_bounds = array<i64: 32, 32>}, {pipeline_mode = #tpu.pipeline_mode<synchronous>, transform_indices = @transform_10, window_bounds = array<i64: 1, 32>}, {pipeline_mode = #tpu.pipeline_mode<synchronous>, transform_indices = @transform_11, window_bounds = array<i64: 1, 32>}, {pipeline_mode = #tpu.pipeline_mode<synchronous>, transform_indices = @transform_12, window_bounds = array<i64: 1, 32>}, {transform_indices = @transform_13, window_bounds = array<i64: 16, 32>}, {transform_indices = @transform_14, window_bounds = array<i64: 16, 32>}, {transform_indices = @transform_15, window_bounds = array<i64: 16, 32>}, {transform_indices = @transform_16, window_bounds = array<i64: 16, 32>}, {transform_indices = @transform_17, window_bounds = array<i64: 16, 32>}, {transform_indices = @transform_18, window_bounds = array<i64: 16, 32>}]} {
    %c0 = arith.constant 0 : index
    %c0_0 = arith.constant 0 : index
    %0 = vector.load %arg1[%c0, %c0_0] : memref<16x32xf32, #tpu.memory_space<vmem>>, vector<16x32xf32>
    %c0_1 = arith.constant 0 : index
    %c0_2 = arith.constant 0 : index
    %1 = vector.load %arg2[%c0_1, %c0_2] : memref<32x8xf32, #tpu.memory_space<vmem>>, vector<32x8xf32>
    %cst = arith.constant dense<0.000000e+00> : vector<16x8xf32>
    %2 = tpu.matmul %0, %1, %cst {dimension_numbers = #tpu.dot_dimension_numbers<[1], [0], [0], [1], [0, 0, 1, 1], [], []>} : vector<16x32xf32>, vector<32x8xf32>, vector<16x8xf32> -> vector<16x8xf32>
    %c0_3 = arith.constant 0 : index
    %c0_4 = arith.constant 0 : index
    %3 = vector.load %arg3[%c0_3, %c0_4] : memref<8x32xf32, #tpu.memory_space<vmem>>, vector<8x32xf32>
    %cst_5 = arith.constant dense<0.000000e+00> : vector<16x32xf32>
    %4 = tpu.matmul %2, %3, %cst_5 {dimension_numbers = #tpu.dot_dimension_numbers<[1], [0], [0], [1], [0, 0, 1, 1], [], []>} : vector<16x8xf32>, vector<8x32xf32>, vector<16x32xf32> -> vector<16x32xf32>
    %c0_6 = arith.constant 0 : index
    %c0_7 = arith.constant 0 : index
    %5 = vector.load %arg11[%c0_6, %c0_7] : memref<1x32xf32, #tpu.memory_space<vmem>>, vector<1x32xf32>
    %6 = vector.broadcast %5 : vector<1x32xf32> to vector<16x32xf32>
    %7 = arith.addf %4, %6 : vector<16x32xf32>
    %c0_8 = arith.constant 0 : index
    %c0_9 = arith.constant 0 : index
    %8 = vector.load %arg14[%c0_8, %c0_9] : memref<16x32xf32, #tpu.memory_space<vmem>>, vector<16x32xf32>
    tpu.vector_store %arg14[%c0_8, %c0_9], %7 {strides = array<i32>} : memref<16x32xf32, #tpu.memory_space<vmem>>, vector<16x32xf32>,
    %c0_10 = arith.constant 0 : index
    %c0_11 = arith.constant 0 : index
    %9 = vector.load %arg4[%c0_10, %c0_11] : memref<32x8xf32, #tpu.memory_space<vmem>>, vector<32x8xf32>
    %cst_12 = arith.constant dense<0.000000e+00> : vector<16x8xf32>
    %10 = tpu.matmul %0, %9, %cst_12 {dimension_numbers = #tpu.dot_dimension_numbers<[1], [0], [0], [1], [0, 0, 1, 1], [], []>} : vector<16x32xf32>, vector<32x8xf32>, vector<16x8xf32> -> vector<16x8xf32>
    %c0_13 = arith.constant 0 : index
    %c0_14 = arith.constant 0 : index
    %11 = vector.load %arg5[%c0_13, %c0_14] : memref<8x32xf32, #tpu.memory_space<vmem>>, vector<8x32xf32>
    %cst_15 = arith.constant dense<0.000000e+00> : vector<16x32xf32>
    %12 = tpu.matmul %10, %11, %cst_15 {dimension_numbers = #tpu.dot_dimension_numbers<[1], [0], [0], [1], [0, 0, 1, 1], [], []>} : vector<16x8xf32>, vector<8x32xf32>, vector<16x32xf32> -> vector<16x32xf32>
    %c0_16 = arith.constant 0 : index
    %c0_17 = arith.constant 0 : index
    %13 = vector.load %arg12[%c0_16, %c0_17] : memref<1x32xf32, #tpu.memory_space<vmem>>, vector<1x32xf32>
    %14 = vector.broadcast %13 : vector<1x32xf32> to vector<16x32xf32>
    %15 = arith.addf %12, %14 : vector<16x32xf32>
    %c0_18 = arith.constant 0 : index
    %c0_19 = arith.constant 0 : index
    %16 = vector.load %arg15[%c0_18, %c0_19] : memref<16x32xf32, #tpu.memory_space<vmem>>, vector<16x32xf32>
    tpu.vector_store %arg15[%c0_18, %c0_19], %15 {strides = array<i32>} : memref<16x32xf32, #tpu.memory_space<vmem>>, vector<16x32xf32>,
    %c0_20 = arith.constant 0 : index
    %c0_21 = arith.constant 0 : index
    %17 = vector.load %arg6[%c0_20, %c0_21] : memref<32x8xf32, #tpu.memory_space<vmem>>, vector<32x8xf32>
    %cst_22 = arith.constant dense<0.000000e+00> : vector<16x8xf32>
    %18 = tpu.matmul %0, %17, %cst_22 {dimension_numbers = #tpu.dot_dimension_numbers<[1], [0], [0], [1], [0, 0, 1, 1], [], []>} : vector<16x32xf32>, vector<32x8xf32>, vector<16x8xf32> -> vector<16x8xf32>
    %c0_23 = arith.constant 0 : index
    %c0_24 = arith.constant 0 : index
    %19 = vector.load %arg7[%c0_23, %c0_24] : memref<8x32xf32, #tpu.memory_space<vmem>>, vector<8x32xf32>
    %cst_25 = arith.constant dense<0.000000e+00> : vector<16x32xf32>
    %20 = tpu.matmul %18, %19, %cst_25 {dimension_numbers = #tpu.dot_dimension_numbers<[1], [0], [0], [1], [0, 0, 1, 1], [], []>} : vector<16x8xf32>, vector<8x32xf32>, vector<16x32xf32> -> vector<16x32xf32>
    %c0_26 = arith.constant 0 : index
    %c0_27 = arith.constant 0 : index
    %21 = vector.load %arg13[%c0_26, %c0_27] : memref<1x32xf32, #tpu.memory_space<vmem>>, vector<1x32xf32>
    %22 = vector.broadcast %21 : vector<1x32xf32> to vector<16x32xf32>
    %23 = arith.addf %20, %22 : vector<16x32xf32>
    %c0_28 = arith.constant 0 : index
    %c0_29 = arith.constant 0 : index
    %24 = vector.load %arg16[%c0_28, %c0_29] : memref<16x32xf32, #tpu.memory_space<vmem>>, vector<16x32xf32>
    tpu.vector_store %arg16[%c0_28, %c0_29], %23 {strides = array<i32>} : memref<16x32xf32, #tpu.memory_space<vmem>>, vector<16x32xf32>,
    %c0_30 = arith.constant 0 : index
    %c0_31 = arith.constant 0 : index
    %25 = vector.load %arg8[%c0_30, %c0_31] : memref<32x32xf32, #tpu.memory_space<vmem>>, vector<32x32xf32>
    %cst_32 = arith.constant dense<0.000000e+00> : vector<16x32xf32>
    %26 = tpu.matmul %0, %25, %cst_32 {dimension_numbers = #tpu.dot_dimension_numbers<[1], [0], [0], [1], [0, 0, 1, 1], [], []>} : vector<16x32xf32>, vector<32x32xf32>, vector<16x32xf32> -> vector<16x32xf32>
    %c0_33 = arith.constant 0 : index
    %c0_34 = arith.constant 0 : index
    %27 = vector.load %arg11[%c0_33, %c0_34] : memref<1x32xf32, #tpu.memory_space<vmem>>, vector<1x32xf32>
    %28 = vector.broadcast %27 : vector<1x32xf32> to vector<16x32xf32>
    %29 = arith.addf %26, %28 : vector<16x32xf32>
    %c0_35 = arith.constant 0 : index
    %c0_36 = arith.constant 0 : index
    %30 = vector.load %arg17[%c0_35, %c0_36] : memref<16x32xf32, #tpu.memory_space<vmem>>, vector<16x32xf32>
    tpu.vector_store %arg17[%c0_35, %c0_36], %29 {strides = array<i32>} : memref<16x32xf32, #tpu.memory_space<vmem>>, vector<16x32xf32>,
    %c0_37 = arith.constant 0 : index
    %c0_38 = arith.constant 0 : index
    %31 = vector.load %arg9[%c0_37, %c0_38] : memref<32x32xf32, #tpu.memory_space<vmem>>, vector<32x32xf32>
    %cst_39 = arith.constant dense<0.000000e+00> : vector<16x32xf32>
    %32 = tpu.matmul %0, %31, %cst_39 {dimension_numbers = #tpu.dot_dimension_numbers<[1], [0], [0], [1], [0, 0, 1, 1], [], []>} : vector<16x32xf32>, vector<32x32xf32>, vector<16x32xf32> -> vector<16x32xf32>
    %c0_40 = arith.constant 0 : index
    %c0_41 = arith.constant 0 : index
    %33 = vector.load %arg12[%c0_40, %c0_41] : memref<1x32xf32, #tpu.memory_space<vmem>>, vector<1x32xf32>
    %34 = vector.broadcast %33 : vector<1x32xf32> to vector<16x32xf32>
    %35 = arith.addf %32, %34 : vector<16x32xf32>
    %c0_42 = arith.constant 0 : index
    %c0_43 = arith.constant 0 : index
    %36 = vector.load %arg18[%c0_42, %c0_43] : memref<16x32xf32, #tpu.memory_space<vmem>>, vector<16x32xf32>
    tpu.vector_store %arg18[%c0_42, %c0_43], %35 {strides = array<i32>} : memref<16x32xf32, #tpu.memory_space<vmem>>, vector<16x32xf32>,
    %c0_44 = arith.constant 0 : index
    %c0_45 = arith.constant 0 : index
    %37 = vector.load %arg10[%c0_44, %c0_45] : memref<32x32xf32, #tpu.memory_space<vmem>>, vector<32x32xf32>
    %cst_46 = arith.constant dense<0.000000e+00> : vector<16x32xf32>
    %38 = tpu.matmul %0, %37, %cst_46 {dimension_numbers = #tpu.dot_dimension_numbers<[1], [0], [0], [1], [0, 0, 1, 1], [], []>} : vector<16x32xf32>, vector<32x32xf32>, vector<16x32xf32> -> vector<16x32xf32>
    %c0_47 = arith.constant 0 : index
    %c0_48 = arith.constant 0 : index
    %39 = vector.load %arg13[%c0_47, %c0_48] : memref<1x32xf32, #tpu.memory_space<vmem>>, vector<1x32xf32>
    %40 = vector.broadcast %39 : vector<1x32xf32> to vector<16x32xf32>
    %41 = arith.addf %38, %40 : vector<16x32xf32>
    %c0_49 = arith.constant 0 : index
    %c0_50 = arith.constant 0 : index
    %42 = vector.load %arg19[%c0_49, %c0_50] : memref<16x32xf32, #tpu.memory_space<vmem>>, vector<16x32xf32>
    tpu.vector_store %arg19[%c0_49, %c0_50], %41 {strides = array<i32>} : memref<16x32xf32, #tpu.memory_space<vmem>>, vector<16x32xf32>,
    return
  }
  func.func @transform_0(%arg0: i32) -> (i32, i32) {
    %c0_i32 = arith.constant 0 : i32
    %c0_i32_0 = arith.constant 0 : i32
    return %arg0, %c0_i32 : i32, i32
  }
  func.func @transform_1(%arg0: i32) -> (i32, i32) {
    %c0_i32 = arith.constant 0 : i32
    %c0_i32_0 = arith.constant 0 : i32
    %c0_i32_1 = arith.constant 0 : i32
    return %c0_i32, %c0_i32_0 : i32, i32
  }
  func.func @transform_2(%arg0: i32) -> (i32, i32) {
    %c0_i32 = arith.constant 0 : i32
    %c0_i32_0 = arith.constant 0 : i32
    %c0_i32_1 = arith.constant 0 : i32
    return %c0_i32, %c0_i32_0 : i32, i32
  }
  func.func @transform_3(%arg0: i32) -> (i32, i32) {
    %c0_i32 = arith.constant 0 : i32
    %c0_i32_0 = arith.constant 0 : i32
    %c0_i32_1 = arith.constant 0 : i32
    return %c0_i32, %c0_i32_0 : i32, i32
  }
  func.func @transform_4(%arg0: i32) -> (i32, i32) {
    %c0_i32 = arith.constant 0 : i32
    %c0_i32_0 = arith.constant 0 : i32
    %c0_i32_1 = arith.constant 0 : i32
    return %c0_i32, %c0_i32_0 : i32, i32
  }
  func.func @transform_5(%arg0: i32) -> (i32, i32) {
    %c0_i32 = arith.constant 0 : i32
    %c0_i32_0 = arith.constant 0 : i32
    %c0_i32_1 = arith.constant 0 : i32
    return %c0_i32, %c0_i32_0 : i32, i32
  }
  func.func @transform_6(%arg0: i32) -> (i32, i32) {
    %c0_i32 = arith.constant 0 : i32
    %c0_i32_0 = arith.constant 0 : i32
    %c0_i32_1 = arith.constant 0 : i32
    return %c0_i32, %c0_i32_0 : i32, i32
  }
  func.func @transform_7(%arg0: i32) -> (i32, i32) {
    %c0_i32 = arith.constant 0 : i32
    %c0_i32_0 = arith.constant 0 : i32
    %c0_i32_1 = arith.constant 0 : i32
    return %c0_i32, %c0_i32_0 : i32, i32
  }
  func.func @transform_8(%arg0: i32) -> (i32, i32) {
    %c0_i32 = arith.constant 0 : i32
    %c0_i32_0 = arith.constant 0 : i32
    %c0_i32_1 = arith.constant 0 : i32
    return %c0_i32, %c0_i32_0 : i32, i32
  }
  func.func @transform_9(%arg0: i32) -> (i32, i32) {
    %c0_i32 = arith.constant 0 : i32
    %c0_i32_0 = arith.constant 0 : i32
    %c0_i32_1 = arith.constant 0 : i32
    return %c0_i32, %c0_i32_0 : i32, i32
  }
  func.func @transform_10(%arg0: i32) -> (i32, i32) {
    %c0_i32 = arith.constant 0 : i32
    %c0_i32_0 = arith.constant 0 : i32
    %c0_i32_1 = arith.constant 0 : i32
    return %c0_i32, %c0_i32_0 : i32, i32
  }
  func.func @transform_11(%arg0: i32) -> (i32, i32) {
    %c0_i32 = arith.constant 0 : i32
    %c0_i32_0 = arith.constant 0 : i32
    %c0_i32_1 = arith.constant 0 : i32
    return %c0_i32, %c0_i32_0 : i32, i32
  }
  func.func @transform_12(%arg0: i32) -> (i32, i32) {
    %c0_i32 = arith.constant 0 : i32
    %c0_i32_0 = arith.constant 0 : i32
    %c0_i32_1 = arith.constant 0 : i32
    return %c0_i32, %c0_i32_0 : i32, i32
  }
  func.func @transform_13(%arg0: i32) -> (i32, i32) {
    %c0_i32 = arith.constant 0 : i32
    %c0_i32_0 = arith.constant 0 : i32
    return %arg0, %c0_i32 : i32, i32
  }
  func.func @transform_14(%arg0: i32) -> (i32, i32) {
    %c0_i32 = arith.constant 0 : i32
    %c0_i32_0 = arith.constant 0 : i32
    return %arg0, %c0_i32 : i32, i32
  }
  func.func @transform_15(%arg0: i32) -> (i32, i32) {
    %c0_i32 = arith.constant 0 : i32
    %c0_i32_0 = arith.constant 0 : i32
    return %arg0, %c0_i32 : i32, i32
  }
  func.func @transform_16(%arg0: i32) -> (i32, i32) {
    %c0_i32 = arith.constant 0 : i32
    %c0_i32_0 = arith.constant 0 : i32
    return %arg0, %c0_i32 : i32, i32
  }
  func.func @transform_17(%arg0: i32) -> (i32, i32) {
    %c0_i32 = arith.constant 0 : i32
    %c0_i32_0 = arith.constant 0 : i32
    return %arg0, %c0_i32 : i32, i32
  }
  func.func @transform_18(%arg0: i32) -> (i32, i32) {
    %c0_i32 = arith.constant 0 : i32
    %c0_i32_0 = arith.constant 0 : i32
    return %arg0, %c0_i32 : i32, i32
  }
}

</mosaic_0001>

<llo_original>
// kernel: tpu_custom_call.1
$region0: #{tpu_custom_call.1}
  #allocation0 [shape = 'u32[]', space=smem, size = 0x4, offset = 0x4, fixed_abs, tag = 'smem constant byte address 0x4 - core index']
  #allocation1 [shape = 'u32[144,128]{1,0:T(1,128)}', space=vmem, size = 0x12000, scoped, tag = 'internal scratch']
  %s0 = inlined_call_operand.vmem [shape: f32[16,32], index: 0, kind: input, shape index: {}]
  %s1 = inlined_call_operand.vmem [shape: f32[32,8], index: 1, kind: input, shape index: {}]
  %s2 = inlined_call_operand.hbm [shape: f32[8,32], index: 2, kind: input, shape index: {}]
  %s3 = inlined_call_operand.vmem [shape: f32[32,8], index: 3, kind: input, shape index: {}]
  %s4 = inlined_call_operand.hbm [shape: f32[8,32], index: 4, kind: input, shape index: {}]
  %s5 = inlined_call_operand.vmem [shape: f32[32,8], index: 5, kind: input, shape index: {}]
  %s6 = inlined_call_operand.vmem [shape: f32[8,32], index: 6, kind: input, shape index: {}]
  %s7 = inlined_call_operand.vmem [shape: f32[32,32], index: 7, kind: input, shape index: {}]
  %s8 = inlined_call_operand.vmem [shape: f32[32,32], index: 8, kind: input, shape index: {}]
  %s9 = inlined_call_operand.vmem [shape: f32[32,32], index: 9, kind: input, shape index: {}]
  %s10 = inlined_call_operand.vmem [shape: f32[1,32], index: 10, kind: input, shape index: {}]
  %s11 = inlined_call_operand.vmem [shape: f32[1,32], index: 11, kind: input, shape index: {}]
  %s12 = inlined_call_operand.vmem [shape: f32[1,32], index: 12, kind: input, shape index: {}]
  %s13 = inlined_call_operand.hbm [shape: f32[16,32], index: 13, kind: output, shape index: {0}]
  %s14 = inlined_call_operand.hbm [shape: f32[16,32], index: 14, kind: output, shape index: {1}]
  %s15 = inlined_call_operand.hbm [shape: f32[16,32], index: 15, kind: output, shape index: {2}]
  %s16 = inlined_call_operand.hbm [shape: f32[16,32], index: 16, kind: output, shape index: {3}]
  %s17 = inlined_call_operand.hbm [shape: f32[16,32], index: 17, kind: output, shape index: {4}]
  %s18 = inlined_call_operand.hbm [shape: f32[16,32], index: 18, kind: output, shape index: {5}]
  %19 = xla_tuple %s13, %s14, %s15, %s16, %s17, %s18
  %s20 = sld [smem:[#allocation0]]
  $region110: #{tpu_custom_call.1} parent=0
    _
  %s22 = ssub.s32 1, %s20
  %s23 = scalar_select 0, %s22, %s20
  $region1: #{tpu_custom_call.1} parent=0
    #allocation2 [shape = 'u8[4096]{0}', space=vmem, size = 0x1000, scoped, tag = 'input window, operand 2, single buffered']
    #allocation3 [shape = 's32[1]{0}', space=sflag, size = 0x4, scoped, tag = 'scoped memory for tpu_custom_call.1']
    #allocation4 [shape = 's32[1]{0}', space=sflag, size = 0x4, scoped, tag = 'scoped memory for tpu_custom_call.1']
    #allocation5 [shape = 'u8[4096]{0}', space=vmem, size = 0x1000, scoped, tag = 'input window, operand 4, single buffered']
    #allocation6 [shape = 's32[1]{0}', space=sflag, size = 0x4, scoped, tag = 'scoped memory for tpu_custom_call.1']
    #allocation7 [shape = 'u8[8192]{0}', space=vmem, size = 0x2000, scoped, tag = 'output window, operand 0, single buffered']
    #allocation8 [shape = 'u8[8192]{0}', space=vmem, size = 0x2000, scoped, tag = 'output window, operand 1, single buffered']
    #allocation9 [shape = 's32[1]{0}', space=sflag, size = 0x4, scoped, tag = 'scoped memory for tpu_custom_call.1']
    #allocation10 [shape = 'u8[8192]{0}', space=vmem, size = 0x2000, scoped, tag = 'output window, operand 2, single buffered']
    #allocation11 [shape = 'u8[8192]{0}', space=vmem, size = 0x2000, scoped, tag = 'output window, operand 3, single buffered']
    #allocation12 [shape = 's32[1]{0}', space=sflag, size = 0x4, scoped, tag = 'scoped memory for tpu_custom_call.1']
    #allocation13 [shape = 'u8[8192]{0}', space=vmem, size = 0x2000, scoped, tag = 'output window, operand 4, single buffered']
    #allocation14 [shape = 'u8[8192]{0}', space=vmem, size = 0x2000, scoped, tag = 'output window, operand 5, single buffered']
    #allocation15 [shape = 's32[1]{0}', space=sflag, size = 0x4, scoped, tag = 'scoped memory for tpu_custom_call.1']
    %24 = vsyncpa [#allocation3], 0
    %25 = vsyncpa [#allocation6], 0
    %26 = vsyncpa [#allocation4], 0
    %27 = vsyncpa [#allocation9], 0
    %28 = vsyncpa [#allocation12], 0
    %29 = vsyncpa [#allocation15], 0
    // Predicated region
    $region2: #{tpu_custom_call.1} parent=1 // pred_check
      _
    $region3: #{tpu_custom_call.1} parent=1 // pred_check_branch
      %31 = sbr.rel (0) target = $region5
    $region4: #{tpu_custom_call.1} parent=1 // pred_region
      _
    $region5: #{tpu_custom_call.1} parent=1 // pred_fallthru
      _
    // Predicated region
    $region6: #{tpu_custom_call.1} parent=1 // pred_check
      _
    $region7: #{tpu_custom_call.1} parent=1 // pred_check_branch
      %33 = sbr.rel (0) target = $region9
    $region8: #{tpu_custom_call.1} parent=1 // pred_region
      _
    $region9: #{tpu_custom_call.1} parent=1 // pred_fallthru
      _
    // Predicated region
    $region10: #{tpu_custom_call.1} parent=1 // pred_check
      _
    $region11: #{tpu_custom_call.1} parent=1 // pred_check_branch
      %35 = sbr.rel (0) target = $region13
    $region12: #{tpu_custom_call.1} parent=1 // pred_region
      %s37 = ssub.s32 128, 128
      %38 = vsyncadd [#allocation3], %s37
      %s40 = sshll.u32 [#allocation2], 4
      %s41 = int_to_ptr.vmem [resolvable:$true] %s40
      %43 = dma.hbm_to_vmem [thread:$0]  %s2, 128, %s41, [#allocation3]
    $region13: #{tpu_custom_call.1} parent=1 // pred_fallthru
      _
    // Predicated region
    $region14: #{tpu_custom_call.1} parent=1 // pred_check
      _
    $region15: #{tpu_custom_call.1} parent=1 // pred_check_branch
      %45 = sbr.rel (0) target = $region17
    $region16: #{tpu_custom_call.1} parent=1 // pred_region
      _
    $region17: #{tpu_custom_call.1} parent=1 // pred_fallthru
      _
    // Predicated region
    $region18: #{tpu_custom_call.1} parent=1 // pred_check
      _
    $region19: #{tpu_custom_call.1} parent=1 // pred_check_branch
      %47 = sbr.rel (0) target = $region21
    $region20: #{tpu_custom_call.1} parent=1 // pred_region
      %s49 = ssub.s32 128, 128
      %50 = vsyncadd [#allocation6], %s49
      %s52 = sshll.u32 [#allocation5], 4
      %s53 = int_to_ptr.vmem [resolvable:$true] %s52
      %55 = dma.hbm_to_vmem [thread:$0]  %s4, 128, %s53, [#allocation6]
    $region21: #{tpu_custom_call.1} parent=1 // pred_fallthru
      _
    // Predicated region
    $region22: #{tpu_custom_call.1} parent=1 // pred_check
      _
    $region23: #{tpu_custom_call.1} parent=1 // pred_check_branch
      %57 = sbr.rel (0) target = $region25
    $region24: #{tpu_custom_call.1} parent=1 // pred_region
      _
    $region25: #{tpu_custom_call.1} parent=1 // pred_fallthru
      _
    // Predicated region
    $region26: #{tpu_custom_call.1} parent=1 // pred_check
      _
    $region27: #{tpu_custom_call.1} parent=1 // pred_check_branch
      %59 = sbr.rel (0) target = $region29
    $region28: #{tpu_custom_call.1} parent=1 // pred_region
      _
    $region29: #{tpu_custom_call.1} parent=1 // pred_fallthru
      _
    // Predicated region
    $region30: #{tpu_custom_call.1} parent=1 // pred_check
      _
    $region31: #{tpu_custom_call.1} parent=1 // pred_check_branch
      %61 = sbr.rel (0) target = $region33
    $region32: #{tpu_custom_call.1} parent=1 // pred_region
      _
    $region33: #{tpu_custom_call.1} parent=1 // pred_fallthru
      _
    // Predicated region
    $region34: #{tpu_custom_call.1} parent=1 // pred_check
      _
    $region35: #{tpu_custom_call.1} parent=1 // pred_check_branch
      %63 = sbr.rel (0) target = $region37
    $region36: #{tpu_custom_call.1} parent=1 // pred_region
      _
    $region37: #{tpu_custom_call.1} parent=1 // pred_fallthru
      _
    // Predicated region
    $region38: #{tpu_custom_call.1} parent=1 // pred_check
      _
    $region39: #{tpu_custom_call.1} parent=1 // pred_check_branch
      %65 = sbr.rel (0) target = $region41
    $region40: #{tpu_custom_call.1} parent=1 // pred_region
      _
    $region41: #{tpu_custom_call.1} parent=1 // pred_fallthru
      _
    // Predicated region
    $region42: #{tpu_custom_call.1} parent=1 // pred_check
      _
    $region43: #{tpu_custom_call.1} parent=1 // pred_check_branch
      %67 = sbr.rel (0) target = $region45
    $region44: #{tpu_custom_call.1} parent=1 // pred_region
      _
    $region45: #{tpu_custom_call.1} parent=1 // pred_fallthru
      _
    // Predicated region
    $region46: #{tpu_custom_call.1} parent=1 // pred_check
      _
    $region47: #{tpu_custom_call.1} parent=1 // pred_check_branch
      %69 = sbr.rel (0) target = $region49
    $region48: #{tpu_custom_call.1} parent=1 // pred_region
      _
    $region49: #{tpu_custom_call.1} parent=1 // pred_fallthru
      _
    // Predicated region
    $region50: #{tpu_custom_call.1} parent=1 // pred_check
      _
    $region51: #{tpu_custom_call.1} parent=1 // pred_check_branch
      %71 = sbr.rel (0) target = $region53
    $region52: #{tpu_custom_call.1} parent=1 // pred_region
      _
    $region53: #{tpu_custom_call.1} parent=1 // pred_fallthru
      _
    // Predicated region
    $region54: #{tpu_custom_call.1} parent=1 // pred_check
      _
    $region55: #{tpu_custom_call.1} parent=1 // pred_check_branch
      %73 = sbr.rel (0) target = $region57
    $region56: #{tpu_custom_call.1} parent=1 // pred_region
      %74 = dma.done [#allocation3], 128
    $region57: #{tpu_custom_call.1} parent=1 // pred_fallthru
      _
    // Predicated region
    $region58: #{tpu_custom_call.1} parent=1 // pred_check
      _
    $region59: #{tpu_custom_call.1} parent=1 // pred_check_branch
      %76 = sbr.rel (0) target = $region61
    $region60: #{tpu_custom_call.1} parent=1 // pred_region
      %77 = dma.done [#allocation6], 128
    $region61: #{tpu_custom_call.1} parent=1 // pred_fallthru
      _
    %v78 = vld [vmem:[%s0] sm:$0xff]
    %v79 = vld [vmem:[%s0 + $0x8] sm:$0xff]
    %v80 = vld [vmem:[%s1] sm:$0xff]
    %v81 = vld [vmem:[%s1 + $0x8] sm:$0xff]
    %v82 = vld [vmem:[%s1 + $0x10] sm:$0xff]
    %v83 = vld [vmem:[%s1 + $0x18] sm:$0xff]
    %vm84 = vcmask 261120
    %v86 = vsel %vm84, %v78, 0
    %v89 = vsel %vm84, %v79, 0
    %91 = vmatprep.subr.mxu0 0.0
    %92 = vmatpush1.msra.mxu0 %v80
    %93 = vmatprep.subr.mxu0 0.0
    %94 = vmatpush1.msra.mxu0 %v81
    %95 = vmatprep.subr.mxu0 0.0
    %96 = vmatpush1.msra.mxu0 %v82
    %97 = vmatprep.subr.mxu0 0.0
    %98 = vmatpush1.msra.mxu0 %v83
    %99 = vmatprep.subr.mxu0 0.0
    %100 = vmatpush1.msra.mxu0 0.0
    %101 = vmatprep.subr.mxu0 0.0
    %102 = vmatpush1.msra.mxu0 0.0
    %103 = vmatprep.subr.mxu0 0.0
    %104 = vmatpush1.msra.mxu0 0.0
    %105 = vmatprep.subr.mxu0 0.0
    %106 = vmatpush1.msra.mxu0 0.0
    %107 = vmatprep.subr.mxu0 0.0
    %108 = vmatpush1.msra.mxu0 0.0
    %109 = vmatprep.subr.mxu0 0.0
    %110 = vmatpush1.msra.mxu0 0.0
    %111 = vmatprep.subr.mxu0 0.0
    %112 = vmatpush1.msra.mxu0 0.0
    %113 = vmatprep.subr.mxu0 0.0
    %114 = vmatpush1.msra.mxu0 0.0
    %115 = vmatprep.subr.mxu0 0.0
    %116 = vmatpush1.msra.mxu0 0.0
    %117 = vmatprep.subr.mxu0 0.0
    %118 = vmatpush1.msra.mxu0 0.0
    %119 = vmatprep.subr.mxu0 0.0
    %120 = vmatpush1.msra.mxu0 0.0
    %121 = vmatprep.subr.mxu0 0.0
    %122 = vmatpush1.msra.mxu0 0.0
    %123 = vmatprep.subr.mxu0 0.0
    %124 = vmatpush1.msra.mxu0 0.0
    %125 = vmatprep.subr.mxu0 0.0
    %126 = vmatpush1.msra.mxu0 0.0
    %127 = vmatprep.subr.mxu0 0.0
    %128 = vmatpush1.msra.mxu0 0.0
    %129 = vmatprep.subr.mxu0 0.0
    %130 = vmatpush1.msra.mxu0 0.0
    %131 = vmatprep.subr.mxu0 0.0
    %132 = vmatpush1.msra.mxu0 0.0
    %133 = vmatprep.subr.mxu0 0.0
    %134 = vmatpush1.msra.mxu0 0.0
    %135 = vmatprep.subr.mxu0 0.0
    %136 = vmatpush1.msra.mxu0 0.0
    %137 = vmatprep.subr.mxu0 0.0
    %138 = vmatpush1.msra.mxu0 0.0
    %139 = vmatprep.subr.mxu0 0.0
    %140 = vmatpush1.msra.mxu0 0.0
    %141 = vmatprep.subr.mxu0 0.0
    %142 = vmatpush1.msra.mxu0 0.0
    %143 = vmatprep.subr.mxu0 0.0
    %144 = vmatpush1.msra.mxu0 0.0
    %145 = vmatprep.subr.mxu0 0.0
    %146 = vmatpush1.msra.mxu0 0.0
    %147 = vmatprep.subr.mxu0 0.0
    %148 = vmatpush1.msra.mxu0 0.0
    %149 = vmatprep.subr.mxu0 0.0
    %150 = vmatpush1.msra.mxu0 0.0
    %151 = vmatprep.subr.mxu0 0.0
    %152 = vmatpush1.msra.mxu0 0.0
    %153 = vmatprep.subr.mxu0 0.0
    %154 = vmatpush1.msra.mxu0 0.0
    %155 = vmatprep.mubr.f32.mxu0 0.0
    %156 = vmatmul.mubr.f32.gmra.mrb[0].mxu0 %v86
    %v157 = vpop.f32.mrb[0].mxu0
    %v158 = vadd.f32 0.0, %v157
    %v159 = vpop.f32.mrb[0].mxu0
    %160 = vmatprep.mubr.f32.mxu0 0.0
    %161 = vmatmul.mubr.f32.gmra.mrb[0].mxu0 %v89
    %v162 = vpop.f32.mrb[0].mxu0
    %v163 = vadd.f32 0.0, %v162
    %v164 = vpop.f32.mrb[0].mxu0
    %165 = vdwg.mxu0
    %v166 = vld [vmem:[#allocation2] sm:$0xff]
    %v167 = vld [vmem:[%s10] sm:$0x1]
    %v169 = vlaneseq
    %v170 = vshrl.u32 %v169, 7
    %v171 = vsub.s32 0, %v170
    %v172 = vrot.slane %v167, %v171
    %vm174 = vcmask 64512
    %v176 = vsel %vm174, %v158, 0
    %v179 = vsel %vm174, %v163, 0
    %181 = vmatprep.subr.mxu0 0.0
    %182 = vmatpush1.msra.mxu0 %v166
    %183 = vmatprep.subr.mxu0 0.0
    %184 = vmatpush1.msra.mxu0 0.0
    %185 = vmatprep.subr.mxu0 0.0
    %186 = vmatpush1.msra.mxu0 0.0
    %187 = vmatprep.subr.mxu0 0.0
    %188 = vmatpush1.msra.mxu0 0.0
    %189 = vmatprep.subr.mxu0 0.0
    %190 = vmatpush1.msra.mxu0 0.0
    %191 = vmatprep.subr.mxu0 0.0
    %192 = vmatpush1.msra.mxu0 0.0
    %193 = vmatprep.subr.mxu0 0.0
    %194 = vmatpush1.msra.mxu0 0.0
    %195 = vmatprep.subr.mxu0 0.0
    %196 = vmatpush1.msra.mxu0 0.0
    %197 = vmatprep.subr.mxu0 0.0
    %198 = vmatpush1.msra.mxu0 0.0
    %199 = vmatprep.subr.mxu0 0.0
    %200 = vmatpush1.msra.mxu0 0.0
    %201 = vmatprep.subr.mxu0 0.0
    %202 = vmatpush1.msra.mxu0 0.0
    %203 = vmatprep.subr.mxu0 0.0
    %204 = vmatpush1.msra.mxu0 0.0
    %205 = vmatprep.subr.mxu0 0.0
    %206 = vmatpush1.msra.mxu0 0.0
    %207 = vmatprep.subr.mxu0 0.0
    %208 = vmatpush1.msra.mxu0 0.0
    %209 = vmatprep.subr.mxu0 0.0
    %210 = vmatpush1.msra.mxu0 0.0
    %211 = vmatprep.subr.mxu0 0.0
    %212 = vmatpush1.msra.mxu0 0.0
    %213 = vmatprep.subr.mxu0 0.0
    %214 = vmatpush1.msra.mxu0 0.0
    %215 = vmatprep.subr.mxu0 0.0
    %216 = vmatpush1.msra.mxu0 0.0
    %217 = vmatprep.subr.mxu0 0.0
    %218 = vmatpush1.msra.mxu0 0.0
    %219 = vmatprep.subr.mxu0 0.0
    %220 = vmatpush1.msra.mxu0 0.0
    %221 = vmatprep.subr.mxu0 0.0
    %222 = vmatpush1.msra.mxu0 0.0
    %223 = vmatprep.subr.mxu0 0.0
    %224 = vmatpush1.msra.mxu0 0.0
    %225 = vmatprep.subr.mxu0 0.0
    %226 = vmatpush1.msra.mxu0 0.0
    %227 = vmatprep.subr.mxu0 0.0
    %228 = vmatpush1.msra.mxu0 0.0
    %229 = vmatprep.subr.mxu0 0.0
    %230 = vmatpush1.msra.mxu0 0.0
    %231 = vmatprep.subr.mxu0 0.0
    %232 = vmatpush1.msra.mxu0 0.0
    %233 = vmatprep.subr.mxu0 0.0
    %234 = vmatpush1.msra.mxu0 0.0
    %235 = vmatprep.subr.mxu0 0.0
    %236 = vmatpush1.msra.mxu0 0.0
    %237 = vmatprep.subr.mxu0 0.0
    %238 = vmatpush1.msra.mxu0 0.0
    %239 = vmatprep.subr.mxu0 0.0
    %240 = vmatpush1.msra.mxu0 0.0
    %241 = vmatprep.subr.mxu0 0.0
    %242 = vmatpush1.msra.mxu0 0.0
    %243 = vmatprep.subr.mxu0 0.0
    %244 = vmatpush1.msra.mxu0 0.0
    %245 = vmatprep.mubr.f32.mxu0 0.0
    %246 = vmatmul.mubr.f32.gmra.mrb[0].mxu0 %v176
    %v247 = vpop.f32.mrb[0].mxu0
    %v248 = vadd.f32 %v172, %v247
    %v249 = vpop.f32.mrb[0].mxu0
    %250 = vmatprep.mubr.f32.mxu0 0.0
    %251 = vmatmul.mubr.f32.gmra.mrb[0].mxu0 %v179
    %v252 = vpop.f32.mrb[0].mxu0
    %v253 = vadd.f32 %v172, %v252
    %v254 = vpop.f32.mrb[0].mxu0
    %255 = vdwg.mxu0
    %256 = vst.msk [vmem:[#allocation7] sm:$0xff] %vm84, %v248
    %257 = vst.msk [vmem:[#allocation7 + $0x8] sm:$0xff] %vm84, %v253
    %v258 = vld [vmem:[%s3] sm:$0xff]
    %v259 = vld [vmem:[%s3 + $0x8] sm:$0xff]
    %v260 = vld [vmem:[%s3 + $0x10] sm:$0xff]
    %v261 = vld [vmem:[%s3 + $0x18] sm:$0xff]
    %262 = vmatprep.subr.mxu0 0.0
    %263 = vmatpush1.msra.mxu0 %v258
    %264 = vmatprep.subr.mxu0 0.0
    %265 = vmatpush1.msra.mxu0 %v259
    %266 = vmatprep.subr.mxu0 0.0
    %267 = vmatpush1.msra.mxu0 %v260
    %268 = vmatprep.subr.mxu0 0.0
    %269 = vmatpush1.msra.mxu0 %v261
    %270 = vmatprep.subr.mxu0 0.0
    %271 = vmatpush1.msra.mxu0 0.0
    %272 = vmatprep.subr.mxu0 0.0
    %273 = vmatpush1.msra.mxu0 0.0
    %274 = vmatprep.subr.mxu0 0.0
    %275 = vmatpush1.msra.mxu0 0.0
    %276 = vmatprep.subr.mxu0 0.0
    %277 = vmatpush1.msra.mxu0 0.0
    %278 = vmatprep.subr.mxu0 0.0
    %279 = vmatpush1.msra.mxu0 0.0
    %280 = vmatprep.subr.mxu0 0.0
    %281 = vmatpush1.msra.mxu0 0.0
    %282 = vmatprep.subr.mxu0 0.0
    %283 = vmatpush1.msra.mxu0 0.0
    %284 = vmatprep.subr.mxu0 0.0
    %285 = vmatpush1.msra.mxu0 0.0
    %286 = vmatprep.subr.mxu0 0.0
    %287 = vmatpush1.msra.mxu0 0.0
    %288 = vmatprep.subr.mxu0 0.0
    %289 = vmatpush1.msra.mxu0 0.0
    %290 = vmatprep.subr.mxu0 0.0
    %291 = vmatpush1.msra.mxu0 0.0
    %292 = vmatprep.subr.mxu0 0.0
    %293 = vmatpush1.msra.mxu0 0.0
    %294 = vmatprep.subr.mxu0 0.0
    %295 = vmatpush1.msra.mxu0 0.0
    %296 = vmatprep.subr.mxu0 0.0
    %297 = vmatpush1.msra.mxu0 0.0
    %298 = vmatprep.subr.mxu0 0.0
    %299 = vmatpush1.msra.mxu0 0.0
    %300 = vmatprep.subr.mxu0 0.0
    %301 = vmatpush1.msra.mxu0 0.0
    %302 = vmatprep.subr.mxu0 0.0
    %303 = vmatpush1.msra.mxu0 0.0
    %304 = vmatprep.subr.mxu0 0.0
    %305 = vmatpush1.msra.mxu0 0.0
    %306 = vmatprep.subr.mxu0 0.0
    %307 = vmatpush1.msra.mxu0 0.0
    %308 = vmatprep.subr.mxu0 0.0
    %309 = vmatpush1.msra.mxu0 0.0
    %310 = vmatprep.subr.mxu0 0.0
    %311 = vmatpush1.msra.mxu0 0.0
    %312 = vmatprep.subr.mxu0 0.0
    %313 = vmatpush1.msra.mxu0 0.0
    %314 = vmatprep.subr.mxu0 0.0
    %315 = vmatpush1.msra.mxu0 0.0
    %316 = vmatprep.subr.mxu0 0.0
    %317 = vmatpush1.msra.mxu0 0.0
    %318 = vmatprep.subr.mxu0 0.0
    %319 = vmatpush1.msra.mxu0 0.0
    %320 = vmatprep.subr.mxu0 0.0
    %321 = vmatpush1.msra.mxu0 0.0
    %322 = vmatprep.subr.mxu0 0.0
    %323 = vmatpush1.msra.mxu0 0.0
    %324 = vmatprep.subr.mxu0 0.0
    %325 = vmatpush1.msra.mxu0 0.0
    %326 = vmatprep.mubr.f32.mxu0 0.0
    %327 = vmatmul.mubr.f32.gmra.mrb[0].mxu0 %v86
    %v328 = vpop.f32.mrb[0].mxu0
    %v329 = vadd.f32 0.0, %v328
    %v330 = vpop.f32.mrb[0].mxu0
    %331 = vmatprep.mubr.f32.mxu0 0.0
    %332 = vmatmul.mubr.f32.gmra.mrb[0].mxu0 %v89
    %v333 = vpop.f32.mrb[0].mxu0
    %v334 = vadd.f32 0.0, %v333
    %v335 = vpop.f32.mrb[0].mxu0
    %336 = vdwg.mxu0
    %v337 = vld [vmem:[#allocation5] sm:$0xff]
    %v338 = vld [vmem:[%s11] sm:$0x1]
    %v340 = vlaneseq
    %v341 = vshrl.u32 %v340, 7
    %v342 = vsub.s32 0, %v341
    %v343 = vrot.slane %v338, %v342
    %v346 = vsel %vm174, %v329, 0
    %v349 = vsel %vm174, %v334, 0
    %351 = vmatprep.subr.mxu0 0.0
    %352 = vmatpush1.msra.mxu0 %v337
    %353 = vmatprep.subr.mxu0 0.0
    %354 = vmatpush1.msra.mxu0 0.0
    %355 = vmatprep.subr.mxu0 0.0
    %356 = vmatpush1.msra.mxu0 0.0
    %357 = vmatprep.subr.mxu0 0.0
    %358 = vmatpush1.msra.mxu0 0.0
    %359 = vmatprep.subr.mxu0 0.0
    %360 = vmatpush1.msra.mxu0 0.0
    %361 = vmatprep.subr.mxu0 0.0
    %362 = vmatpush1.msra.mxu0 0.0
    %363 = vmatprep.subr.mxu0 0.0
    %364 = vmatpush1.msra.mxu0 0.0
    %365 = vmatprep.subr.mxu0 0.0
    %366 = vmatpush1.msra.mxu0 0.0
    %367 = vmatprep.subr.mxu0 0.0
    %368 = vmatpush1.msra.mxu0 0.0
    %369 = vmatprep.subr.mxu0 0.0
    %370 = vmatpush1.msra.mxu0 0.0
    %371 = vmatprep.subr.mxu0 0.0
    %372 = vmatpush1.msra.mxu0 0.0
    %373 = vmatprep.subr.mxu0 0.0
    %374 = vmatpush1.msra.mxu0 0.0
    %375 = vmatprep.subr.mxu0 0.0
    %376 = vmatpush1.msra.mxu0 0.0
    %377 = vmatprep.subr.mxu0 0.0
    %378 = vmatpush1.msra.mxu0 0.0
    %379 = vmatprep.subr.mxu0 0.0
    %380 = vmatpush1.msra.mxu0 0.0
    %381 = vmatprep.subr.mxu0 0.0
    %382 = vmatpush1.msra.mxu0 0.0
    %383 = vmatprep.subr.mxu0 0.0
    %384 = vmatpush1.msra.mxu0 0.0
    %385 = vmatprep.subr.mxu0 0.0
    %386 = vmatpush1.msra.mxu0 0.0
    %387 = vmatprep.subr.mxu0 0.0
    %388 = vmatpush1.msra.mxu0 0.0
    %389 = vmatprep.subr.mxu0 0.0
    %390 = vmatpush1.msra.mxu0 0.0
    %391 = vmatprep.subr.mxu0 0.0
    %392 = vmatpush1.msra.mxu0 0.0
    %393 = vmatprep.subr.mxu0 0.0
    %394 = vmatpush1.msra.mxu0 0.0
    %395 = vmatprep.subr.mxu0 0.0
    %396 = vmatpush1.msra.mxu0 0.0
    %397 = vmatprep.subr.mxu0 0.0
    %398 = vmatpush1.msra.mxu0 0.0
    %399 = vmatprep.subr.mxu0 0.0
    %400 = vmatpush1.msra.mxu0 0.0
    %401 = vmatprep.subr.mxu0 0.0
    %402 = vmatpush1.msra.mxu0 0.0
    %403 = vmatprep.subr.mxu0 0.0
    %404 = vmatpush1.msra.mxu0 0.0
    %405 = vmatprep.subr.mxu0 0.0
    %406 = vmatpush1.msra.mxu0 0.0
    %407 = vmatprep.subr.mxu0 0.0
    %408 = vmatpush1.msra.mxu0 0.0
    %409 = vmatprep.subr.mxu0 0.0
    %410 = vmatpush1.msra.mxu0 0.0
    %411 = vmatprep.subr.mxu0 0.0
    %412 = vmatpush1.msra.mxu0 0.0
    %413 = vmatprep.subr.mxu0 0.0
    %414 = vmatpush1.msra.mxu0 0.0
    %415 = vmatprep.mubr.f32.mxu0 0.0
    %416 = vmatmul.mubr.f32.gmra.mrb[0].mxu0 %v346
    %v417 = vpop.f32.mrb[0].mxu0
    %v418 = vadd.f32 %v343, %v417
    %v419 = vpop.f32.mrb[0].mxu0
    %420 = vmatprep.mubr.f32.mxu0 0.0
    %421 = vmatmul.mubr.f32.gmra.mrb[0].mxu0 %v349
    %v422 = vpop.f32.mrb[0].mxu0
    %v423 = vadd.f32 %v343, %v422
    %v424 = vpop.f32.mrb[0].mxu0
    %425 = vdwg.mxu0
    %426 = vst.msk [vmem:[#allocation8] sm:$0xff] %vm84, %v418
    %427 = vst.msk [vmem:[#allocation8 + $0x8] sm:$0xff] %vm84, %v423
    %v428 = vld [vmem:[%s5] sm:$0xff]
    %v429 = vld [vmem:[%s5 + $0x8] sm:$0xff]
    %v430 = vld [vmem:[%s5 + $0x10] sm:$0xff]
    %v431 = vld [vmem:[%s5 + $0x18] sm:$0xff]
    %432 = vmatprep.subr.mxu0 0.0
    %433 = vmatpush1.msra.mxu0 %v428
    %434 = vmatprep.subr.mxu0 0.0
    %435 = vmatpush1.msra.mxu0 %v429
    %436 = vmatprep.subr.mxu0 0.0
    %437 = vmatpush1.msra.mxu0 %v430
    %438 = vmatprep.subr.mxu0 0.0
    %439 = vmatpush1.msra.mxu0 %v431
    %440 = vmatprep.subr.mxu0 0.0
    %441 = vmatpush1.msra.mxu0 0.0
    %442 = vmatprep.subr.mxu0 0.0
    %443 = vmatpush1.msra.mxu0 0.0
    %444 = vmatprep.subr.mxu0 0.0
    %445 = vmatpush1.msra.mxu0 0.0
    %446 = vmatprep.subr.mxu0 0.0
    %447 = vmatpush1.msra.mxu0 0.0
    %448 = vmatprep.subr.mxu0 0.0
    %449 = vmatpush1.msra.mxu0 0.0
    %450 = vmatprep.subr.mxu0 0.0
    %451 = vmatpush1.msra.mxu0 0.0
    %452 = vmatprep.subr.mxu0 0.0
    %453 = vmatpush1.msra.mxu0 0.0
    %454 = vmatprep.subr.mxu0 0.0
    %455 = vmatpush1.msra.mxu0 0.0
    %456 = vmatprep.subr.mxu0 0.0
    %457 = vmatpush1.msra.mxu0 0.0
    %458 = vmatprep.subr.mxu0 0.0
    %459 = vmatpush1.msra.mxu0 0.0
    %460 = vmatprep.subr.mxu0 0.0
    %461 = vmatpush1.msra.mxu0 0.0
    %462 = vmatprep.subr.mxu0 0.0
    %463 = vmatpush1.msra.mxu0 0.0
    %464 = vmatprep.subr.mxu0 0.0
    %465 = vmatpush1.msra.mxu0 0.0
    %466 = vmatprep.subr.mxu0 0.0
    %467 = vmatpush1.msra.mxu0 0.0
    %468 = vmatprep.subr.mxu0 0.0
    %469 = vmatpush1.msra.mxu0 0.0
    %470 = vmatprep.subr.mxu0 0.0
    %471 = vmatpush1.msra.mxu0 0.0
    %472 = vmatprep.subr.mxu0 0.0
    %473 = vmatpush1.msra.mxu0 0.0
    %474 = vmatprep.subr.mxu0 0.0
    %475 = vmatpush1.msra.mxu0 0.0
    %476 = vmatprep.subr.mxu0 0.0
    %477 = vmatpush1.msra.mxu0 0.0
    %478 = vmatprep.subr.mxu0 0.0
    %479 = vmatpush1.msra.mxu0 0.0
    %480 = vmatprep.subr.mxu0 0.0
    %481 = vmatpush1.msra.mxu0 0.0
    %482 = vmatprep.subr.mxu0 0.0
    %483 = vmatpush1.msra.mxu0 0.0
    %484 = vmatprep.subr.mxu0 0.0
    %485 = vmatpush1.msra.mxu0 0.0
    %486 = vmatprep.subr.mxu0 0.0
    %487 = vmatpush1.msra.mxu0 0.0
    %488 = vmatprep.subr.mxu0 0.0
    %489 = vmatpush1.msra.mxu0 0.0
    %490 = vmatprep.subr.mxu0 0.0
    %491 = vmatpush1.msra.mxu0 0.0
    %492 = vmatprep.subr.mxu0 0.0
    %493 = vmatpush1.msra.mxu0 0.0
    %494 = vmatprep.subr.mxu0 0.0
    %495 = vmatpush1.msra.mxu0 0.0
    %496 = vmatprep.mubr.f32.mxu0 0.0
    %497 = vmatmul.mubr.f32.gmra.mrb[0].mxu0 %v86
    %v498 = vpop.f32.mrb[0].mxu0
    %v499 = vadd.f32 0.0, %v498
    %v500 = vpop.f32.mrb[0].mxu0
    %501 = vmatprep.mubr.f32.mxu0 0.0
    %502 = vmatmul.mubr.f32.gmra.mrb[0].mxu0 %v89
    %v503 = vpop.f32.mrb[0].mxu0
    %v504 = vadd.f32 0.0, %v503
    %v505 = vpop.f32.mrb[0].mxu0
    %506 = vdwg.mxu0
    %v507 = vld [vmem:[%s6] sm:$0xff]
    %v508 = vld [vmem:[%s12] sm:$0x1]
    %v510 = vlaneseq
    %v511 = vshrl.u32 %v510, 7
    %v512 = vsub.s32 0, %v511
    %v513 = vrot.slane %v508, %v512
    %v516 = vsel %vm174, %v499, 0
    %v519 = vsel %vm174, %v504, 0
    %521 = vmatprep.subr.mxu0 0.0
    %522 = vmatpush1.msra.mxu0 %v507
    %523 = vmatprep.subr.mxu0 0.0
    %524 = vmatpush1.msra.mxu0 0.0
    %525 = vmatprep.subr.mxu0 0.0
    %526 = vmatpush1.msra.mxu0 0.0
    %527 = vmatprep.subr.mxu0 0.0
    %528 = vmatpush1.msra.mxu0 0.0
    %529 = vmatprep.subr.mxu0 0.0
    %530 = vmatpush1.msra.mxu0 0.0
    %531 = vmatprep.subr.mxu0 0.0
    %532 = vmatpush1.msra.mxu0 0.0
    %533 = vmatprep.subr.mxu0 0.0
    %534 = vmatpush1.msra.mxu0 0.0
    %535 = vmatprep.subr.mxu0 0.0
    %536 = vmatpush1.msra.mxu0 0.0
    %537 = vmatprep.subr.mxu0 0.0
    %538 = vmatpush1.msra.mxu0 0.0
    %539 = vmatprep.subr.mxu0 0.0
    %540 = vmatpush1.msra.mxu0 0.0
    %541 = vmatprep.subr.mxu0 0.0
    %542 = vmatpush1.msra.mxu0 0.0
    %543 = vmatprep.subr.mxu0 0.0
    %544 = vmatpush1.msra.mxu0 0.0
    %545 = vmatprep.subr.mxu0 0.0
    %546 = vmatpush1.msra.mxu0 0.0
    %547 = vmatprep.subr.mxu0 0.0
    %548 = vmatpush1.msra.mxu0 0.0
    %549 = vmatprep.subr.mxu0 0.0
    %550 = vmatpush1.msra.mxu0 0.0
    %551 = vmatprep.subr.mxu0 0.0
    %552 = vmatpush1.msra.mxu0 0.0
    %553 = vmatprep.subr.mxu0 0.0
    %554 = vmatpush1.msra.mxu0 0.0
    %555 = vmatprep.subr.mxu0 0.0
    %556 = vmatpush1.msra.mxu0 0.0
    %557 = vmatprep.subr.mxu0 0.0
    %558 = vmatpush1.msra.mxu0 0.0
    %559 = vmatprep.subr.mxu0 0.0
    %560 = vmatpush1.msra.mxu0 0.0
    %561 = vmatprep.subr.mxu0 0.0
    %562 = vmatpush1.msra.mxu0 0.0
    %563 = vmatprep.subr.mxu0 0.0
    %564 = vmatpush1.msra.mxu0 0.0
    %565 = vmatprep.subr.mxu0 0.0
    %566 = vmatpush1.msra.mxu0 0.0
    %567 = vmatprep.subr.mxu0 0.0
    %568 = vmatpush1.msra.mxu0 0.0
    %569 = vmatprep.subr.mxu0 0.0
    %570 = vmatpush1.msra.mxu0 0.0
    %571 = vmatprep.subr.mxu0 0.0
    %572 = vmatpush1.msra.mxu0 0.0
    %573 = vmatprep.subr.mxu0 0.0
    %574 = vmatpush1.msra.mxu0 0.0
    %575 = vmatprep.subr.mxu0 0.0
    %576 = vmatpush1.msra.mxu0 0.0
    %577 = vmatprep.subr.mxu0 0.0
    %578 = vmatpush1.msra.mxu0 0.0
    %579 = vmatprep.subr.mxu0 0.0
    %580 = vmatpush1.msra.mxu0 0.0
    %581 = vmatprep.subr.mxu0 0.0
    %582 = vmatpush1.msra.mxu0 0.0
    %583 = vmatprep.subr.mxu0 0.0
    %584 = vmatpush1.msra.mxu0 0.0
    %585 = vmatprep.mubr.f32.mxu0 0.0
    %586 = vmatmul.mubr.f32.gmra.mrb[0].mxu0 %v516
    %v587 = vpop.f32.mrb[0].mxu0
    %v588 = vadd.f32 %v513, %v587
    %v589 = vpop.f32.mrb[0].mxu0
    %590 = vmatprep.mubr.f32.mxu0 0.0
    %591 = vmatmul.mubr.f32.gmra.mrb[0].mxu0 %v519
    %v592 = vpop.f32.mrb[0].mxu0
    %v593 = vadd.f32 %v513, %v592
    %v594 = vpop.f32.mrb[0].mxu0
    %595 = vdwg.mxu0
    %596 = vst.msk [vmem:[#allocation10] sm:$0xff] %vm84, %v588
    %597 = vst.msk [vmem:[#allocation10 + $0x8] sm:$0xff] %vm84, %v593
    %v598 = vld [vmem:[%s7] sm:$0xff]
    %v599 = vld [vmem:[%s7 + $0x8] sm:$0xff]
    %v600 = vld [vmem:[%s7 + $0x10] sm:$0xff]
    %v601 = vld [vmem:[%s7 + $0x18] sm:$0xff]
    %v602 = vld [vmem:[%s10] sm:$0x1]
    %v604 = vlaneseq
    %v605 = vshrl.u32 %v604, 7
    %v606 = vsub.s32 0, %v605
    %v607 = vrot.slane %v602, %v606
    %609 = vmatprep.subr.mxu0 0.0
    %610 = vmatpush1.msra.mxu0 %v598
    %611 = vmatprep.subr.mxu0 0.0
    %612 = vmatpush1.msra.mxu0 %v599
    %613 = vmatprep.subr.mxu0 0.0
    %614 = vmatpush1.msra.mxu0 %v600
    %615 = vmatprep.subr.mxu0 0.0
    %616 = vmatpush1.msra.mxu0 %v601
    %617 = vmatprep.subr.mxu0 0.0
    %618 = vmatpush1.msra.mxu0 0.0
    %619 = vmatprep.subr.mxu0 0.0
    %620 = vmatpush1.msra.mxu0 0.0
    %621 = vmatprep.subr.mxu0 0.0
    %622 = vmatpush1.msra.mxu0 0.0
    %623 = vmatprep.subr.mxu0 0.0
    %624 = vmatpush1.msra.mxu0 0.0
    %625 = vmatprep.subr.mxu0 0.0
    %626 = vmatpush1.msra.mxu0 0.0
    %627 = vmatprep.subr.mxu0 0.0
    %628 = vmatpush1.msra.mxu0 0.0
    %629 = vmatprep.subr.mxu0 0.0
    %630 = vmatpush1.msra.mxu0 0.0
    %631 = vmatprep.subr.mxu0 0.0
    %632 = vmatpush1.msra.mxu0 0.0
    %633 = vmatprep.subr.mxu0 0.0
    %634 = vmatpush1.msra.mxu0 0.0
    %635 = vmatprep.subr.mxu0 0.0
    %636 = vmatpush1.msra.mxu0 0.0
    %637 = vmatprep.subr.mxu0 0.0
    %638 = vmatpush1.msra.mxu0 0.0
    %639 = vmatprep.subr.mxu0 0.0
    %640 = vmatpush1.msra.mxu0 0.0
    %641 = vmatprep.subr.mxu0 0.0
    %642 = vmatpush1.msra.mxu0 0.0
    %643 = vmatprep.subr.mxu0 0.0
    %644 = vmatpush1.msra.mxu0 0.0
    %645 = vmatprep.subr.mxu0 0.0
    %646 = vmatpush1.msra.mxu0 0.0
    %647 = vmatprep.subr.mxu0 0.0
    %648 = vmatpush1.msra.mxu0 0.0
    %649 = vmatprep.subr.mxu0 0.0
    %650 = vmatpush1.msra.mxu0 0.0
    %651 = vmatprep.subr.mxu0 0.0
    %652 = vmatpush1.msra.mxu0 0.0
    %653 = vmatprep.subr.mxu0 0.0
    %654 = vmatpush1.msra.mxu0 0.0
    %655 = vmatprep.subr.mxu0 0.0
    %656 = vmatpush1.msra.mxu0 0.0
    %657 = vmatprep.subr.mxu0 0.0
    %658 = vmatpush1.msra.mxu0 0.0
    %659 = vmatprep.subr.mxu0 0.0
    %660 = vmatpush1.msra.mxu0 0.0
    %661 = vmatprep.subr.mxu0 0.0
    %662 = vmatpush1.msra.mxu0 0.0
    %663 = vmatprep.subr.mxu0 0.0
    %664 = vmatpush1.msra.mxu0 0.0
    %665 = vmatprep.subr.mxu0 0.0
    %666 = vmatpush1.msra.mxu0 0.0
    %667 = vmatprep.subr.mxu0 0.0
    %668 = vmatpush1.msra.mxu0 0.0
    %669 = vmatprep.subr.mxu0 0.0
    %670 = vmatpush1.msra.mxu0 0.0
    %671 = vmatprep.subr.mxu0 0.0
    %672 = vmatpush1.msra.mxu0 0.0
    %673 = vmatprep.mubr.f32.mxu0 0.0
    %674 = vmatmul.mubr.f32.gmra.mrb[0].mxu0 %v86
    %v675 = vpop.f32.mrb[0].mxu0
    %v676 = vadd.f32 %v607, %v675
    %v677 = vpop.f32.mrb[0].mxu0
    %678 = vmatprep.mubr.f32.mxu0 0.0
    %679 = vmatmul.mubr.f32.gmra.mrb[0].mxu0 %v89
    %v680 = vpop.f32.mrb[0].mxu0
    %v681 = vadd.f32 %v607, %v680
    %v682 = vpop.f32.mrb[0].mxu0
    %683 = vdwg.mxu0
    %684 = vst.msk [vmem:[#allocation11] sm:$0xff] %vm84, %v676
    %685 = vst.msk [vmem:[#allocation11 + $0x8] sm:$0xff] %vm84, %v681
    %v686 = vld [vmem:[%s8] sm:$0xff]
    %v687 = vld [vmem:[%s8 + $0x8] sm:$0xff]
    %v688 = vld [vmem:[%s8 + $0x10] sm:$0xff]
    %v689 = vld [vmem:[%s8 + $0x18] sm:$0xff]
    %v690 = vld [vmem:[%s11] sm:$0x1]
    %v692 = vlaneseq
    %v693 = vshrl.u32 %v692, 7
    %v694 = vsub.s32 0, %v693
    %v695 = vrot.slane %v690, %v694
    %697 = vmatprep.subr.mxu0 0.0
    %698 = vmatpush1.msra.mxu0 %v686
    %699 = vmatprep.subr.mxu0 0.0
    %700 = vmatpush1.msra.mxu0 %v687
    %701 = vmatprep.subr.mxu0 0.0
    %702 = vmatpush1.msra.mxu0 %v688
    %703 = vmatprep.subr.mxu0 0.0
    %704 = vmatpush1.msra.mxu0 %v689
    %705 = vmatprep.subr.mxu0 0.0
    %706 = vmatpush1.msra.mxu0 0.0
    %707 = vmatprep.subr.mxu0 0.0
    %708 = vmatpush1.msra.mxu0 0.0
    %709 = vmatprep.subr.mxu0 0.0
    %710 = vmatpush1.msra.mxu0 0.0
    %711 = vmatprep.subr.mxu0 0.0
    %712 = vmatpush1.msra.mxu0 0.0
    %713 = vmatprep.subr.mxu0 0.0
    %714 = vmatpush1.msra.mxu0 0.0
    %715 = vmatprep.subr.mxu0 0.0
    %716 = vmatpush1.msra.mxu0 0.0
    %717 = vmatprep.subr.mxu0 0.0
    %718 = vmatpush1.msra.mxu0 0.0
    %719 = vmatprep.subr.mxu0 0.0
    %720 = vmatpush1.msra.mxu0 0.0
    %721 = vmatprep.subr.mxu0 0.0
    %722 = vmatpush1.msra.mxu0 0.0
    %723 = vmatprep.subr.mxu0 0.0
    %724 = vmatpush1.msra.mxu0 0.0
    %725 = vmatprep.subr.mxu0 0.0
    %726 = vmatpush1.msra.mxu0 0.0
    %727 = vmatprep.subr.mxu0 0.0
    %728 = vmatpush1.msra.mxu0 0.0
    %729 = vmatprep.subr.mxu0 0.0
    %730 = vmatpush1.msra.mxu0 0.0
    %731 = vmatprep.subr.mxu0 0.0
    %732 = vmatpush1.msra.mxu0 0.0
    %733 = vmatprep.subr.mxu0 0.0
    %734 = vmatpush1.msra.mxu0 0.0
    %735 = vmatprep.subr.mxu0 0.0
    %736 = vmatpush1.msra.mxu0 0.0
    %737 = vmatprep.subr.mxu0 0.0
    %738 = vmatpush1.msra.mxu0 0.0
    %739 = vmatprep.subr.mxu0 0.0
    %740 = vmatpush1.msra.mxu0 0.0
    %741 = vmatprep.subr.mxu0 0.0
    %742 = vmatpush1.msra.mxu0 0.0
    %743 = vmatprep.subr.mxu0 0.0
    %744 = vmatpush1.msra.mxu0 0.0
    %745 = vmatprep.subr.mxu0 0.0
    %746 = vmatpush1.msra.mxu0 0.0
    %747 = vmatprep.subr.mxu0 0.0
    %748 = vmatpush1.msra.mxu0 0.0
    %749 = vmatprep.subr.mxu0 0.0
    %750 = vmatpush1.msra.mxu0 0.0
    %751 = vmatprep.subr.mxu0 0.0
    %752 = vmatpush1.msra.mxu0 0.0
    %753 = vmatprep.subr.mxu0 0.0
    %754 = vmatpush1.msra.mxu0 0.0
    %755 = vmatprep.subr.mxu0 0.0
    %756 = vmatpush1.msra.mxu0 0.0
    %757 = vmatprep.subr.mxu0 0.0
    %758 = vmatpush1.msra.mxu0 0.0
    %759 = vmatprep.subr.mxu0 0.0
    %760 = vmatpush1.msra.mxu0 0.0
    %761 = vmatprep.mubr.f32.mxu0 0.0
    %762 = vmatmul.mubr.f32.gmra.mrb[0].mxu0 %v86
    %v763 = vpop.f32.mrb[0].mxu0
    %v764 = vadd.f32 %v695, %v763
    %v765 = vpop.f32.mrb[0].mxu0
    %766 = vmatprep.mubr.f32.mxu0 0.0
    %767 = vmatmul.mubr.f32.gmra.mrb[0].mxu0 %v89
    %v768 = vpop.f32.mrb[0].mxu0
    %v769 = vadd.f32 %v695, %v768
    %v770 = vpop.f32.mrb[0].mxu0
    %771 = vdwg.mxu0
    %772 = vst.msk [vmem:[#allocation13] sm:$0xff] %vm84, %v764
    %773 = vst.msk [vmem:[#allocation13 + $0x8] sm:$0xff] %vm84, %v769
    %v774 = vld [vmem:[%s9] sm:$0xff]
    %v775 = vld [vmem:[%s9 + $0x8] sm:$0xff]
    %v776 = vld [vmem:[%s9 + $0x10] sm:$0xff]
    %v777 = vld [vmem:[%s9 + $0x18] sm:$0xff]
    %v778 = vld [vmem:[%s12] sm:$0x1]
    %v780 = vlaneseq
    %v781 = vshrl.u32 %v780, 7
    %v782 = vsub.s32 0, %v781
    %v783 = vrot.slane %v778, %v782
    %785 = vmatprep.subr.mxu0 0.0
    %786 = vmatpush1.msra.mxu0 %v774
    %787 = vmatprep.subr.mxu0 0.0
    %788 = vmatpush1.msra.mxu0 %v775
    %789 = vmatprep.subr.mxu0 0.0
    %790 = vmatpush1.msra.mxu0 %v776
    %791 = vmatprep.subr.mxu0 0.0
    %792 = vmatpush1.msra.mxu0 %v777
    %793 = vmatprep.subr.mxu0 0.0
    %794 = vmatpush1.msra.mxu0 0.0
    %795 = vmatprep.subr.mxu0 0.0
    %796 = vmatpush1.msra.mxu0 0.0
    %797 = vmatprep.subr.mxu0 0.0
    %798 = vmatpush1.msra.mxu0 0.0
    %799 = vmatprep.subr.mxu0 0.0
    %800 = vmatpush1.msra.mxu0 0.0
    %801 = vmatprep.subr.mxu0 0.0
    %802 = vmatpush1.msra.mxu0 0.0
    %803 = vmatprep.subr.mxu0 0.0
    %804 = vmatpush1.msra.mxu0 0.0
    %805 = vmatprep.subr.mxu0 0.0
    %806 = vmatpush1.msra.mxu0 0.0
    %807 = vmatprep.subr.mxu0 0.0
    %808 = vmatpush1.msra.mxu0 0.0
    %809 = vmatprep.subr.mxu0 0.0
    %810 = vmatpush1.msra.mxu0 0.0
    %811 = vmatprep.subr.mxu0 0.0
    %812 = vmatpush1.msra.mxu0 0.0
    %813 = vmatprep.subr.mxu0 0.0
    %814 = vmatpush1.msra.mxu0 0.0
    %815 = vmatprep.subr.mxu0 0.0
    %816 = vmatpush1.msra.mxu0 0.0
    %817 = vmatprep.subr.mxu0 0.0
    %818 = vmatpush1.msra.mxu0 0.0
    %819 = vmatprep.subr.mxu0 0.0
    %820 = vmatpush1.msra.mxu0 0.0
    %821 = vmatprep.subr.mxu0 0.0
    %822 = vmatpush1.msra.mxu0 0.0
    %823 = vmatprep.subr.mxu0 0.0
    %824 = vmatpush1.msra.mxu0 0.0
    %825 = vmatprep.subr.mxu0 0.0
    %826 = vmatpush1.msra.mxu0 0.0
    %827 = vmatprep.subr.mxu0 0.0
    %828 = vmatpush1.msra.mxu0 0.0
    %829 = vmatprep.subr.mxu0 0.0
    %830 = vmatpush1.msra.mxu0 0.0
    %831 = vmatprep.subr.mxu0 0.0
    %832 = vmatpush1.msra.mxu0 0.0
    %833 = vmatprep.subr.mxu0 0.0
    %834 = vmatpush1.msra.mxu0 0.0
    %835 = vmatprep.subr.mxu0 0.0
    %836 = vmatpush1.msra.mxu0 0.0
    %837 = vmatprep.subr.mxu0 0.0
    %838 = vmatpush1.msra.mxu0 0.0
    %839 = vmatprep.subr.mxu0 0.0
    %840 = vmatpush1.msra.mxu0 0.0
    %841 = vmatprep.subr.mxu0 0.0
    %842 = vmatpush1.msra.mxu0 0.0
    %843 = vmatprep.subr.mxu0 0.0
    %844 = vmatpush1.msra.mxu0 0.0
    %845 = vmatprep.subr.mxu0 0.0
    %846 = vmatpush1.msra.mxu0 0.0
    %847 = vmatprep.subr.mxu0 0.0
    %848 = vmatpush1.msra.mxu0 0.0
    %849 = vmatprep.mubr.f32.mxu0 0.0
    %850 = vmatmul.mubr.f32.gmra.mrb[0].mxu0 %v86
    %v851 = vpop.f32.mrb[0].mxu0
    %v852 = vadd.f32 %v783, %v851
    %v853 = vpop.f32.mrb[0].mxu0
    %854 = vmatprep.mubr.f32.mxu0 0.0
    %855 = vmatmul.mubr.f32.gmra.mrb[0].mxu0 %v89
    %v856 = vpop.f32.mrb[0].mxu0
    %v857 = vadd.f32 %v783, %v856
    %v858 = vpop.f32.mrb[0].mxu0
    %859 = vdwg.mxu0
    %860 = vst.msk [vmem:[#allocation14] sm:$0xff] %vm84, %v852
    %861 = vst.msk [vmem:[#allocation14 + $0x8] sm:$0xff] %vm84, %v857
    // Predicated region
    $region62: #{tpu_custom_call.1} parent=1 // pred_check
      _
    $region63: #{tpu_custom_call.1} parent=1 // pred_check_branch
      %863 = sbr.rel (0) target = $region65
    $region64: #{tpu_custom_call.1} parent=1 // pred_region
      %s865 = ssub.s32 256, 256
      %866 = vsyncadd [#allocation4], %s865
      %s867 = sshll.u32 [#allocation7], 4
      %s868 = int_to_ptr.vmem [resolvable:$true] %s867
      %873 = dma.vmem_to_hbm [thread:$0]  %s868, 256, %s13, [#allocation4], 128, 128, 8
    $region65: #{tpu_custom_call.1} parent=1 // pred_fallthru
      _
    // Predicated region
    $region66: #{tpu_custom_call.1} parent=1 // pred_check
      _
    $region67: #{tpu_custom_call.1} parent=1 // pred_check_branch
      %875 = sbr.rel (0) target = $region69
    $region68: #{tpu_custom_call.1} parent=1 // pred_region
      %s877 = ssub.s32 256, 256
      %878 = vsyncadd [#allocation9], %s877
      %s879 = sshll.u32 [#allocation8], 4
      %s880 = int_to_ptr.vmem [resolvable:$true] %s879
      %885 = dma.vmem_to_hbm [thread:$0]  %s880, 256, %s14, [#allocation9], 128, 128, 8
    $region69: #{tpu_custom_call.1} parent=1 // pred_fallthru
      _
    // Predicated region
    $region70: #{tpu_custom_call.1} parent=1 // pred_check
      _
    $region71: #{tpu_custom_call.1} parent=1 // pred_check_branch
      %887 = sbr.rel (0) target = $region73
    $region72: #{tpu_custom_call.1} parent=1 // pred_region
      %s889 = ssub.s32 256, 256
      %890 = vsyncadd [#allocation9], %s889
      %s891 = sshll.u32 [#allocation10], 4
      %s892 = int_to_ptr.vmem [resolvable:$true] %s891
      %897 = dma.vmem_to_hbm [thread:$0]  %s892, 256, %s15, [#allocation9], 128, 128, 8
    $region73: #{tpu_custom_call.1} parent=1 // pred_fallthru
      _
    // Predicated region
    $region74: #{tpu_custom_call.1} parent=1 // pred_check
      _
    $region75: #{tpu_custom_call.1} parent=1 // pred_check_branch
      %899 = sbr.rel (0) target = $region77
    $region76: #{tpu_custom_call.1} parent=1 // pred_region
      %s901 = ssub.s32 256, 256
      %902 = vsyncadd [#allocation12], %s901
      %s903 = sshll.u32 [#allocation11], 4
      %s904 = int_to_ptr.vmem [resolvable:$true] %s903
      %909 = dma.vmem_to_hbm [thread:$0]  %s904, 256, %s16, [#allocation12], 128, 128, 8
    $region77: #{tpu_custom_call.1} parent=1 // pred_fallthru
      _
    // Predicated region
    $region78: #{tpu_custom_call.1} parent=1 // pred_check
      _
    $region79: #{tpu_custom_call.1} parent=1 // pred_check_branch
      %911 = sbr.rel (0) target = $region81
    $region80: #{tpu_custom_call.1} parent=1 // pred_region
      %s913 = ssub.s32 256, 256
      %914 = vsyncadd [#allocation12], %s913
      %s915 = sshll.u32 [#allocation13], 4
      %s916 = int_to_ptr.vmem [resolvable:$true] %s915
      %921 = dma.vmem_to_hbm [thread:$0]  %s916, 256, %s17, [#allocation12], 128, 128, 8
    $region81: #{tpu_custom_call.1} parent=1 // pred_fallthru
      _
    // Predicated region
    $region82: #{tpu_custom_call.1} parent=1 // pred_check
      _
    $region83: #{tpu_custom_call.1} parent=1 // pred_check_branch
      %923 = sbr.rel (0) target = $region85
    $region84: #{tpu_custom_call.1} parent=1 // pred_region
      %s925 = ssub.s32 256, 256
      %926 = vsyncadd [#allocation15], %s925
      %s927 = sshll.u32 [#allocation14], 4
      %s928 = int_to_ptr.vmem [resolvable:$true] %s927
      %933 = dma.vmem_to_hbm [thread:$0]  %s928, 256, %s18, [#allocation15], 128, 128, 8
    $region85: #{tpu_custom_call.1} parent=1 // pred_fallthru
      _
    // Predicated region
    $region86: #{tpu_custom_call.1} parent=1 // pred_check
      _
    $region87: #{tpu_custom_call.1} parent=1 // pred_check_branch
      %935 = sbr.rel (0) target = $region89
    $region88: #{tpu_custom_call.1} parent=1 // pred_region
      %936 = dma.done [#allocation4], 256
    $region89: #{tpu_custom_call.1} parent=1 // pred_fallthru
      _
    // Predicated region
    $region90: #{tpu_custom_call.1} parent=1 // pred_check
      _
    $region91: #{tpu_custom_call.1} parent=1 // pred_check_branch
      %938 = sbr.rel (0) target = $region93
    $region92: #{tpu_custom_call.1} parent=1 // pred_region
      %939 = dma.done [#allocation9], 256
    $region93: #{tpu_custom_call.1} parent=1 // pred_fallthru
      _
    // Predicated region
    $region94: #{tpu_custom_call.1} parent=1 // pred_check
      _
    $region95: #{tpu_custom_call.1} parent=1 // pred_check_branch
      %941 = sbr.rel (0) target = $region97
    $region96: #{tpu_custom_call.1} parent=1 // pred_region
      %942 = dma.done [#allocation9], 256
    $region97: #{tpu_custom_call.1} parent=1 // pred_fallthru
      _
    // Predicated region
    $region98: #{tpu_custom_call.1} parent=1 // pred_check
      _
    $region99: #{tpu_custom_call.1} parent=1 // pred_check_branch
      %944 = sbr.rel (0) target = $region101
    $region100: #{tpu_custom_call.1} parent=1 // pred_region
      %945 = dma.done [#allocation12], 256
    $region101: #{tpu_custom_call.1} parent=1 // pred_fallthru
      _
    // Predicated region
    $region102: #{tpu_custom_call.1} parent=1 // pred_check
      _
    $region103: #{tpu_custom_call.1} parent=1 // pred_check_branch
      %947 = sbr.rel (0) target = $region105
    $region104: #{tpu_custom_call.1} parent=1 // pred_region
      %948 = dma.done [#allocation12], 256
    $region105: #{tpu_custom_call.1} parent=1 // pred_fallthru
      _
    // Predicated region
    $region106: #{tpu_custom_call.1} parent=1 // pred_check
      _
    $region107: #{tpu_custom_call.1} parent=1 // pred_check_branch
      %950 = sbr.rel (0) target = $region109
    $region108: #{tpu_custom_call.1} parent=1 // pred_region
      %951 = dma.done [#allocation15], 256
    $region109: #{tpu_custom_call.1} parent=1 // pred_fallthru
      _
    %952 = vsyncpa [#allocation3], 1
    %953 = vsyncpa [#allocation6], 1
    %954 = vsyncpa [#allocation4], 1
    %955 = vsyncpa [#allocation9], 1
    %956 = vsyncpa [#allocation12], 1
    %957 = vsyncpa [#allocation15], 1

</llo_original>
